<compile_context>
chip_gen: v6e
topology: v6e:2x2x1
jax: 0.10.0
libtpu: 0.0.40
codegen_flags: <defaults>
</compile_context>

<pallas_src>
import jax
import jax.numpy as jnp
from jax.experimental import pallas as pl
from jax.experimental.pallas import tpu as pltpu


def _round_up(x, m):
    return ((x + m - 1) // m) * m


def _outconv_fma_kernel(x_ref, w_ref, b_ref, o_ref):
    """VPU broadcast-FMA path for tiny channel counts.

    x_ref: (n_blk, Cin, t_hw) VMEM
    w_ref: (Cout*Cin,) SMEM f32 (row-major [co, ci])
    b_ref: (Cout,)     SMEM f32
    o_ref: (n_blk, Cout, t_hw) VMEM
    """
    n_blk, cin, _ = x_ref.shape
    cout = o_ref.shape[1]
    x = x_ref[...].astype(jnp.float32)          # (n_blk, Cin, t_hw)
    rows = []
    for co in range(cout):
        acc = x[:, 0, :] * w_ref[co * cin + 0]
        for ci in range(1, cin):
            acc = acc + x[:, ci, :] * w_ref[co * cin + ci]
        rows.append(acc + b_ref[co])            # (n_blk, t_hw) f32
    out = jnp.stack(rows, axis=1)               # (n_blk, Cout, t_hw) f32
    o_ref[...] = out.astype(o_ref.dtype)


def _outconv_mxu_kernel(x_ref, w_ref, b_ref, o_ref):
    """MXU path for larger channel counts.

    x_ref: (n_blk, Cin, t_hw), w_ref: (Cout, Cin), b_ref: (Cout, 1) f32,
    o_ref: (n_blk, Cout, t_hw)
    """
    n_blk = x_ref.shape[0]
    for n in range(n_blk):                      # static unroll over folded N
        acc = jnp.dot(w_ref[...], x_ref[n],
                      preferred_element_type=jnp.float32)   # (Cout, t_hw) f32
        o_ref[n] = (acc + b_ref[...]).astype(o_ref.dtype)


def out_conv(x, weight, bias, *, t_hw=None):
    """1x1 Conv2d forward, NCHW in / NCHW out (PyTorch semantics).

    x:      (N, Cin, H, W)
    weight: (Cout, Cin, 1, 1)
    bias:   (Cout,)
    returns (N, Cout, H, W)
    """
    N, Cin, H, W = x.shape
    Cout = weight.shape[0]
    HW = H * W
    itemsize = jnp.dtype(x.dtype).itemsize

    # No transposes: NCHW stays NCHW, spatial collapses onto the lane axis.
    x3 = x.reshape(N, Cin, HW)

    hw_padded = _round_up(HW, 128)
    sublane = (8 * 4) // itemsize               # f32 -> 8 rows/vreg, bf16 -> 16
    cin_pad = _round_up(Cin, sublane)
    cout_pad = _round_up(Cout, sublane)

    # ---- VMEM budget (safe on v7x: 64 MiB physical per TC) ----
    try:
        vmem_cap = min(int(pltpu.get_tpu_info().vmem_capacity_bytes),
                       64 * 1024 * 1024)
    except Exception:  # pragma: no cover - conservative fallback
        vmem_cap = 64 * 1024 * 1024
    budget = min(48 * 1024 * 1024, (3 * vmem_cap) // 4)   # tile budget

    def bytes_per_lane(n_blk):
        # double-buffered x + out tiles, plus f32 accumulator / cast temp
        return n_blk * (2 * cin_pad * itemsize
                        + 2 * cout_pad * itemsize
                        + 2 * cout_pad * 4)

    # Fold all of N into the block when even a minimum 128-lane tile fits.
    n_blk = N if bytes_per_lane(N) * 128 <= budget else 1

    if t_hw is None:
        # Largest lane tile that fits the budget, multiple of 128.
        t_hw = (budget // bytes_per_lane(n_blk)) // 128 * 128
        t_hw = max(128, min(t_hw, hw_padded, 32768))
        # v7x has 2 TensorCores: keep >= 2 parallel grid steps when possible
        # instead of collapsing to a single huge step.
        if (N // n_blk) * pl.cdiv(HW, t_hw) < 2 and hw_padded >= 256:
            t_hw = _round_up(pl.cdiv(hw_padded, 2), 128)
    t_hw = max(128, min(_round_up(t_hw, 128), hw_padded))

    n_hw_tiles = pl.cdiv(HW, t_hw)
    grid = (N // n_blk, n_hw_tiles)

    x_spec = pl.BlockSpec((n_blk, Cin, t_hw), lambda n, s: (n, 0, s))
    o_spec = pl.BlockSpec((n_blk, Cout, t_hw), lambda n, s: (n, 0, s))

    use_fma = (Cin * Cout <= 64)
    if use_fma:
        kernel = _outconv_fma_kernel
        w_arg = weight.reshape(Cout * Cin).astype(jnp.float32)   # SMEM scalars
        b_arg = bias.reshape(Cout).astype(jnp.float32)
        w_spec = pl.BlockSpec(memory_space=pltpu.MemorySpace.SMEM)
        b_spec = pl.BlockSpec(memory_space=pltpu.MemorySpace.SMEM)
    else:
        kernel = _outconv_mxu_kernel
        w_arg = weight.reshape(Cout, Cin).astype(x.dtype)        # resident VMEM
        b_arg = bias.reshape(Cout, 1).astype(jnp.float32)
        w_spec = pl.BlockSpec((Cout, Cin), lambda n, s: (0, 0))
        b_spec = pl.BlockSpec((Cout, 1), lambda n, s: (0, 0))

    # Scoped-VMEM limit: actual usage (incl. f32 acc) with headroom, capped
    # below v7x's 64 MiB physical VMEM.
    used_vmem = (bytes_per_lane(n_blk) * t_hw
                 + (cout_pad * cin_pad + cout_pad) * 4)
    vmem_limit = int(min(max(2 * used_vmem, 4 * 1024 * 1024),
                         56 * 1024 * 1024))

    cost = pl.CostEstimate(
        flops=2 * N * HW * Cin * Cout,
        transcendentals=0,
        bytes_accessed=(itemsize * N * HW * (Cin + Cout)
                        + 4 * (Cout * Cin + Cout)),
    )

    out3 = pl.pallas_call(
        kernel,
        out_shape=jax.ShapeDtypeStruct((N, Cout, HW), x.dtype),
        grid_spec=pltpu.PrefetchScalarGridSpec(
            num_scalar_prefetch=0,
            grid=grid,
            in_specs=[x_spec, w_spec, b_spec],
            out_specs=o_spec,
        ),
        compiler_params=pltpu.CompilerParams(
            dimension_semantics=("parallel", "parallel"),
            vmem_limit_bytes=vmem_limit,
        ),
        cost_estimate=cost,
    )(x3, w_arg, b_arg)

    # Straight reshape back to NCHW — no transpose.
    return out3.reshape(N, Cout, H, W)


if __name__ == "__main__":
    # Module config: in_channels=4, out_channels=8; input (N=2, C=4, H=16, W=16)
    N, Cin, Cout, H, W = 2, 4, 8, 16, 16

    key = jax.random.PRNGKey(0)
    kx, kw, kb = jax.random.split(key, 3)

    x = jax.random.normal(kx, (N, Cin, H, W), dtype=jnp.float32)

    # Deterministic parameter init (mimics Conv2d default uniform bound 1/sqrt(fan_in)).
    fan_in = Cin * 1 * 1
    bound = 1.0 / (fan_in ** 0.5)
    weight = jax.random.uniform(kw, (Cout, Cin, 1, 1), jnp.float32, -bound, bound)
    bias = jax.random.uniform(kb, (Cout,), jnp.float32, -bound, bound)

    y = out_conv(x, weight, bias)
    y = jax.block_until_ready(y)

    # Reference check (plain JAX 1x1 conv semantics).
    ref = (jnp.einsum("nchw,oc->nohw", x, weight.reshape(Cout, Cin))
           + bias[None, :, None, None])
    assert y.shape == (N, Cout, H, W)
    assert jnp.allclose(y, ref, atol=1e-5, rtol=1e-5)

    print("KERNEL_OK")
</pallas_src>

<mosaic_0001>
module attributes {stable_mosaic.version = 11 : i64} {
  func.func @_outconv_fma_kernel(%arg0: i32, %arg1: i32, %arg2: memref<2x4x128xf32, #tpu.memory_space<vmem>>, %arg3: memref<32xf32, #tpu.memory_space<smem>>, %arg4: memref<8xf32, #tpu.memory_space<smem>>, %arg5: memref<2x8x128xf32, #tpu.memory_space<vmem>>) attributes {dimension_semantics = [#tpu.dimension_semantics<parallel>, #tpu.dimension_semantics<parallel>], iteration_bounds = array<i64: 1, 2>, scalar_prefetch = 0 : i64, scratch_operands = 0 : i64, tpu.core_type = #tpu.core_type<tc>, window_params = [{transform_indices = @transform_0, window_bounds = array<i64: 2, 4, 128>}, {transform_indices = @transform_1, window_bounds = array<i64: 32>}, {transform_indices = @transform_2, window_bounds = array<i64: 8>}, {transform_indices = @transform_3, window_bounds = array<i64: 2, 8, 128>}]} {
    %c0 = arith.constant 0 : index
    %c0_0 = arith.constant 0 : index
    %c0_1 = arith.constant 0 : index
    %0 = vector.load %arg2[%c0, %c0_0, %c0_1] : memref<2x4x128xf32, #tpu.memory_space<vmem>>, vector<2x4x128xf32>
    %1 = vector.extract_strided_slice %0 {offsets = [0, 0, 0], sizes = [2, 1, 128], strides = [1, 1, 1]} : vector<2x4x128xf32> to vector<2x1x128xf32>
    %2 = vector.shape_cast %1 : vector<2x1x128xf32> to vector<2x128xf32>
    %c0_2 = arith.constant 0 : index
    %3 = memref.load %arg3[%c0_2] : memref<32xf32, #tpu.memory_space<smem>>
    %4 = vector.broadcast %3 : f32 to vector<2x128xf32>
    %5 = arith.mulf %2, %4 : vector<2x128xf32>
    %6 = vector.extract_strided_slice %0 {offsets = [0, 1, 0], sizes = [2, 1, 128], strides = [1, 1, 1]} : vector<2x4x128xf32> to vector<2x1x128xf32>
    %7 = vector.shape_cast %6 : vector<2x1x128xf32> to vector<2x128xf32>
    %c1 = arith.constant 1 : index
    %8 = memref.load %arg3[%c1] : memref<32xf32, #tpu.memory_space<smem>>
    %9 = vector.broadcast %8 : f32 to vector<2x128xf32>
    %10 = arith.mulf %7, %9 : vector<2x128xf32>
    %11 = arith.addf %5, %10 : vector<2x128xf32>
    %12 = vector.extract_strided_slice %0 {offsets = [0, 2, 0], sizes = [2, 1, 128], strides = [1, 1, 1]} : vector<2x4x128xf32> to vector<2x1x128xf32>
    %13 = vector.shape_cast %12 : vector<2x1x128xf32> to vector<2x128xf32>
    %c2 = arith.constant 2 : index
    %14 = memref.load %arg3[%c2] : memref<32xf32, #tpu.memory_space<smem>>
    %15 = vector.broadcast %14 : f32 to vector<2x128xf32>
    %16 = arith.mulf %13, %15 : vector<2x128xf32>
    %17 = arith.addf %11, %16 : vector<2x128xf32>
    %18 = vector.extract_strided_slice %0 {offsets = [0, 3, 0], sizes = [2, 1, 128], strides = [1, 1, 1]} : vector<2x4x128xf32> to vector<2x1x128xf32>
    %19 = vector.shape_cast %18 : vector<2x1x128xf32> to vector<2x128xf32>
    %c3 = arith.constant 3 : index
    %20 = memref.load %arg3[%c3] : memref<32xf32, #tpu.memory_space<smem>>
    %21 = vector.broadcast %20 : f32 to vector<2x128xf32>
    %22 = arith.mulf %19, %21 : vector<2x128xf32>
    %23 = arith.addf %17, %22 : vector<2x128xf32>
    %c0_3 = arith.constant 0 : index
    %24 = memref.load %arg4[%c0_3] : memref<8xf32, #tpu.memory_space<smem>>
    %25 = vector.broadcast %24 : f32 to vector<2x128xf32>
    %26 = arith.addf %23, %25 : vector<2x128xf32>
    %27 = vector.extract_strided_slice %0 {offsets = [0, 0, 0], sizes = [2, 1, 128], strides = [1, 1, 1]} : vector<2x4x128xf32> to vector<2x1x128xf32>
    %28 = vector.shape_cast %27 : vector<2x1x128xf32> to vector<2x128xf32>
    %c4 = arith.constant 4 : index
    %29 = memref.load %arg3[%c4] : memref<32xf32, #tpu.memory_space<smem>>
    %30 = vector.broadcast %29 : f32 to vector<2x128xf32>
    %31 = arith.mulf %28, %30 : vector<2x128xf32>
    %32 = vector.extract_strided_slice %0 {offsets = [0, 1, 0], sizes = [2, 1, 128], strides = [1, 1, 1]} : vector<2x4x128xf32> to vector<2x1x128xf32>
    %33 = vector.shape_cast %32 : vector<2x1x128xf32> to vector<2x128xf32>
    %c5 = arith.constant 5 : index
    %34 = memref.load %arg3[%c5] : memref<32xf32, #tpu.memory_space<smem>>
    %35 = vector.broadcast %34 : f32 to vector<2x128xf32>
    %36 = arith.mulf %33, %35 : vector<2x128xf32>
    %37 = arith.addf %31, %36 : vector<2x128xf32>
    %38 = vector.extract_strided_slice %0 {offsets = [0, 2, 0], sizes = [2, 1, 128], strides = [1, 1, 1]} : vector<2x4x128xf32> to vector<2x1x128xf32>
    %39 = vector.shape_cast %38 : vector<2x1x128xf32> to vector<2x128xf32>
    %c6 = arith.constant 6 : index
    %40 = memref.load %arg3[%c6] : memref<32xf32, #tpu.memory_space<smem>>
    %41 = vector.broadcast %40 : f32 to vector<2x128xf32>
    %42 = arith.mulf %39, %41 : vector<2x128xf32>
    %43 = arith.addf %37, %42 : vector<2x128xf32>
    %44 = vector.extract_strided_slice %0 {offsets = [0, 3, 0], sizes = [2, 1, 128], strides = [1, 1, 1]} : vector<2x4x128xf32> to vector<2x1x128xf32>
    %45 = vector.shape_cast %44 : vector<2x1x128xf32> to vector<2x128xf32>
    %c7 = arith.constant 7 : index
    %46 = memref.load %arg3[%c7] : memref<32xf32, #tpu.memory_space<smem>>
    %47 = vector.broadcast %46 : f32 to vector<2x128xf32>
    %48 = arith.mulf %45, %47 : vector<2x128xf32>
    %49 = arith.addf %43, %48 : vector<2x128xf32>
    %c1_4 = arith.constant 1 : index
    %50 = memref.load %arg4[%c1_4] : memref<8xf32, #tpu.memory_space<smem>>
    %51 = vector.broadcast %50 : f32 to vector<2x128xf32>
    %52 = arith.addf %49, %51 : vector<2x128xf32>
    %53 = vector.extract_strided_slice %0 {offsets = [0, 0, 0], sizes = [2, 1, 128], strides = [1, 1, 1]} : vector<2x4x128xf32> to vector<2x1x128xf32>
    %54 = vector.shape_cast %53 : vector<2x1x128xf32> to vector<2x128xf32>
    %c8 = arith.constant 8 : index
    %55 = memref.load %arg3[%c8] : memref<32xf32, #tpu.memory_space<smem>>
    %56 = vector.broadcast %55 : f32 to vector<2x128xf32>
    %57 = arith.mulf %54, %56 : vector<2x128xf32>
    %58 = vector.extract_strided_slice %0 {offsets = [0, 1, 0], sizes = [2, 1, 128], strides = [1, 1, 1]} : vector<2x4x128xf32> to vector<2x1x128xf32>
    %59 = vector.shape_cast %58 : vector<2x1x128xf32> to vector<2x128xf32>
    %c9 = arith.constant 9 : index
    %60 = memref.load %arg3[%c9] : memref<32xf32, #tpu.memory_space<smem>>
    %61 = vector.broadcast %60 : f32 to vector<2x128xf32>
    %62 = arith.mulf %59, %61 : vector<2x128xf32>
    %63 = arith.addf %57, %62 : vector<2x128xf32>
    %64 = vector.extract_strided_slice %0 {offsets = [0, 2, 0], sizes = [2, 1, 128], strides = [1, 1, 1]} : vector<2x4x128xf32> to vector<2x1x128xf32>
    %65 = vector.shape_cast %64 : vector<2x1x128xf32> to vector<2x128xf32>
    %c10 = arith.constant 10 : index
    %66 = memref.load %arg3[%c10] : memref<32xf32, #tpu.memory_space<smem>>
    %67 = vector.broadcast %66 : f32 to vector<2x128xf32>
    %68 = arith.mulf %65, %67 : vector<2x128xf32>
    %69 = arith.addf %63, %68 : vector<2x128xf32>
    %70 = vector.extract_strided_slice %0 {offsets = [0, 3, 0], sizes = [2, 1, 128], strides = [1, 1, 1]} : vector<2x4x128xf32> to vector<2x1x128xf32>
    %71 = vector.shape_cast %70 : vector<2x1x128xf32> to vector<2x128xf32>
    %c11 = arith.constant 11 : index
    %72 = memref.load %arg3[%c11] : memref<32xf32, #tpu.memory_space<smem>>
    %73 = vector.broadcast %72 : f32 to vector<2x128xf32>
    %74 = arith.mulf %71, %73 : vector<2x128xf32>
    %75 = arith.addf %69, %74 : vector<2x128xf32>
    %c2_5 = arith.constant 2 : index
    %76 = memref.load %arg4[%c2_5] : memref<8xf32, #tpu.memory_space<smem>>
    %77 = vector.broadcast %76 : f32 to vector<2x128xf32>
    %78 = arith.addf %75, %77 : vector<2x128xf32>
    %79 = vector.extract_strided_slice %0 {offsets = [0, 0, 0], sizes = [2, 1, 128], strides = [1, 1, 1]} : vector<2x4x128xf32> to vector<2x1x128xf32>
    %80 = vector.shape_cast %79 : vector<2x1x128xf32> to vector<2x128xf32>
    %c12 = arith.constant 12 : index
    %81 = memref.load %arg3[%c12] : memref<32xf32, #tpu.memory_space<smem>>
    %82 = vector.broadcast %81 : f32 to vector<2x128xf32>
    %83 = arith.mulf %80, %82 : vector<2x128xf32>
    %84 = vector.extract_strided_slice %0 {offsets = [0, 1, 0], sizes = [2, 1, 128], strides = [1, 1, 1]} : vector<2x4x128xf32> to vector<2x1x128xf32>
    %85 = vector.shape_cast %84 : vector<2x1x128xf32> to vector<2x128xf32>
    %c13 = arith.constant 13 : index
    %86 = memref.load %arg3[%c13] : memref<32xf32, #tpu.memory_space<smem>>
    %87 = vector.broadcast %86 : f32 to vector<2x128xf32>
    %88 = arith.mulf %85, %87 : vector<2x128xf32>
    %89 = arith.addf %83, %88 : vector<2x128xf32>
    %90 = vector.extract_strided_slice %0 {offsets = [0, 2, 0], sizes = [2, 1, 128], strides = [1, 1, 1]} : vector<2x4x128xf32> to vector<2x1x128xf32>
    %91 = vector.shape_cast %90 : vector<2x1x128xf32> to vector<2x128xf32>
    %c14 = arith.constant 14 : index
    %92 = memref.load %arg3[%c14] : memref<32xf32, #tpu.memory_space<smem>>
    %93 = vector.broadcast %92 : f32 to vector<2x128xf32>
    %94 = arith.mulf %91, %93 : vector<2x128xf32>
    %95 = arith.addf %89, %94 : vector<2x128xf32>
    %96 = vector.extract_strided_slice %0 {offsets = [0, 3, 0], sizes = [2, 1, 128], strides = [1, 1, 1]} : vector<2x4x128xf32> to vector<2x1x128xf32>
    %97 = vector.shape_cast %96 : vector<2x1x128xf32> to vector<2x128xf32>
    %c15 = arith.constant 15 : index
    %98 = memref.load %arg3[%c15] : memref<32xf32, #tpu.memory_space<smem>>
    %99 = vector.broadcast %98 : f32 to vector<2x128xf32>
    %100 = arith.mulf %97, %99 : vector<2x128xf32>
    %101 = arith.addf %95, %100 : vector<2x128xf32>
    %c3_6 = arith.constant 3 : index
    %102 = memref.load %arg4[%c3_6] : memref<8xf32, #tpu.memory_space<smem>>
    %103 = vector.broadcast %102 : f32 to vector<2x128xf32>
    %104 = arith.addf %101, %103 : vector<2x128xf32>
    %105 = vector.extract_strided_slice %0 {offsets = [0, 0, 0], sizes = [2, 1, 128], strides = [1, 1, 1]} : vector<2x4x128xf32> to vector<2x1x128xf32>
    %106 = vector.shape_cast %105 : vector<2x1x128xf32> to vector<2x128xf32>
    %c16 = arith.constant 16 : index
    %107 = memref.load %arg3[%c16] : memref<32xf32, #tpu.memory_space<smem>>
    %108 = vector.broadcast %107 : f32 to vector<2x128xf32>
    %109 = arith.mulf %106, %108 : vector<2x128xf32>
    %110 = vector.extract_strided_slice %0 {offsets = [0, 1, 0], sizes = [2, 1, 128], strides = [1, 1, 1]} : vector<2x4x128xf32> to vector<2x1x128xf32>
    %111 = vector.shape_cast %110 : vector<2x1x128xf32> to vector<2x128xf32>
    %c17 = arith.constant 17 : index
    %112 = memref.load %arg3[%c17] : memref<32xf32, #tpu.memory_space<smem>>
    %113 = vector.broadcast %112 : f32 to vector<2x128xf32>
    %114 = arith.mulf %111, %113 : vector<2x128xf32>
    %115 = arith.addf %109, %114 : vector<2x128xf32>
    %116 = vector.extract_strided_slice %0 {offsets = [0, 2, 0], sizes = [2, 1, 128], strides = [1, 1, 1]} : vector<2x4x128xf32> to vector<2x1x128xf32>
    %117 = vector.shape_cast %116 : vector<2x1x128xf32> to vector<2x128xf32>
    %c18 = arith.constant 18 : index
    %118 = memref.load %arg3[%c18] : memref<32xf32, #tpu.memory_space<smem>>
    %119 = vector.broadcast %118 : f32 to vector<2x128xf32>
    %120 = arith.mulf %117, %119 : vector<2x128xf32>
    %121 = arith.addf %115, %120 : vector<2x128xf32>
    %122 = vector.extract_strided_slice %0 {offsets = [0, 3, 0], sizes = [2, 1, 128], strides = [1, 1, 1]} : vector<2x4x128xf32> to vector<2x1x128xf32>
    %123 = vector.shape_cast %122 : vector<2x1x128xf32> to vector<2x128xf32>
    %c19 = arith.constant 19 : index
    %124 = memref.load %arg3[%c19] : memref<32xf32, #tpu.memory_space<smem>>
    %125 = vector.broadcast %124 : f32 to vector<2x128xf32>
    %126 = arith.mulf %123, %125 : vector<2x128xf32>
    %127 = arith.addf %121, %126 : vector<2x128xf32>
    %c4_7 = arith.constant 4 : index
    %128 = memref.load %arg4[%c4_7] : memref<8xf32, #tpu.memory_space<smem>>
    %129 = vector.broadcast %128 : f32 to vector<2x128xf32>
    %130 = arith.addf %127, %129 : vector<2x128xf32>
    %131 = vector.extract_strided_slice %0 {offsets = [0, 0, 0], sizes = [2, 1, 128], strides = [1, 1, 1]} : vector<2x4x128xf32> to vector<2x1x128xf32>
    %132 = vector.shape_cast %131 : vector<2x1x128xf32> to vector<2x128xf32>
    %c20 = arith.constant 20 : index
    %133 = memref.load %arg3[%c20] : memref<32xf32, #tpu.memory_space<smem>>
    %134 = vector.broadcast %133 : f32 to vector<2x128xf32>
    %135 = arith.mulf %132, %134 : vector<2x128xf32>
    %136 = vector.extract_strided_slice %0 {offsets = [0, 1, 0], sizes = [2, 1, 128], strides = [1, 1, 1]} : vector<2x4x128xf32> to vector<2x1x128xf32>
    %137 = vector.shape_cast %136 : vector<2x1x128xf32> to vector<2x128xf32>
    %c21 = arith.constant 21 : index
    %138 = memref.load %arg3[%c21] : memref<32xf32, #tpu.memory_space<smem>>
    %139 = vector.broadcast %138 : f32 to vector<2x128xf32>
    %140 = arith.mulf %137, %139 : vector<2x128xf32>
    %141 = arith.addf %135, %140 : vector<2x128xf32>
    %142 = vector.extract_strided_slice %0 {offsets = [0, 2, 0], sizes = [2, 1, 128], strides = [1, 1, 1]} : vector<2x4x128xf32> to vector<2x1x128xf32>
    %143 = vector.shape_cast %142 : vector<2x1x128xf32> to vector<2x128xf32>
    %c22 = arith.constant 22 : index
    %144 = memref.load %arg3[%c22] : memref<32xf32, #tpu.memory_space<smem>>
    %145 = vector.broadcast %144 : f32 to vector<2x128xf32>
    %146 = arith.mulf %143, %145 : vector<2x128xf32>
    %147 = arith.addf %141, %146 : vector<2x128xf32>
    %148 = vector.extract_strided_slice %0 {offsets = [0, 3, 0], sizes = [2, 1, 128], strides = [1, 1, 1]} : vector<2x4x128xf32> to vector<2x1x128xf32>
    %149 = vector.shape_cast %148 : vector<2x1x128xf32> to vector<2x128xf32>
    %c23 = arith.constant 23 : index
    %150 = memref.load %arg3[%c23] : memref<32xf32, #tpu.memory_space<smem>>
    %151 = vector.broadcast %150 : f32 to vector<2x128xf32>
    %152 = arith.mulf %149, %151 : vector<2x128xf32>
    %153 = arith.addf %147, %152 : vector<2x128xf32>
    %c5_8 = arith.constant 5 : index
    %154 = memref.load %arg4[%c5_8] : memref<8xf32, #tpu.memory_space<smem>>
    %155 = vector.broadcast %154 : f32 to vector<2x128xf32>
    %156 = arith.addf %153, %155 : vector<2x128xf32>
    %157 = vector.extract_strided_slice %0 {offsets = [0, 0, 0], sizes = [2, 1, 128], strides = [1, 1, 1]} : vector<2x4x128xf32> to vector<2x1x128xf32>
    %158 = vector.shape_cast %157 : vector<2x1x128xf32> to vector<2x128xf32>
    %c24 = arith.constant 24 : index
    %159 = memref.load %arg3[%c24] : memref<32xf32, #tpu.memory_space<smem>>
    %160 = vector.broadcast %159 : f32 to vector<2x128xf32>
    %161 = arith.mulf %158, %160 : vector<2x128xf32>
    %162 = vector.extract_strided_slice %0 {offsets = [0, 1, 0], sizes = [2, 1, 128], strides = [1, 1, 1]} : vector<2x4x128xf32> to vector<2x1x128xf32>
    %163 = vector.shape_cast %162 : vector<2x1x128xf32> to vector<2x128xf32>
    %c25 = arith.constant 25 : index
    %164 = memref.load %arg3[%c25] : memref<32xf32, #tpu.memory_space<smem>>
    %165 = vector.broadcast %164 : f32 to vector<2x128xf32>
    %166 = arith.mulf %163, %165 : vector<2x128xf32>
    %167 = arith.addf %161, %166 : vector<2x128xf32>
    %168 = vector.extract_strided_slice %0 {offsets = [0, 2, 0], sizes = [2, 1, 128], strides = [1, 1, 1]} : vector<2x4x128xf32> to vector<2x1x128xf32>
    %169 = vector.shape_cast %168 : vector<2x1x128xf32> to vector<2x128xf32>
    %c26 = arith.constant 26 : index
    %170 = memref.load %arg3[%c26] : memref<32xf32, #tpu.memory_space<smem>>
    %171 = vector.broadcast %170 : f32 to vector<2x128xf32>
    %172 = arith.mulf %169, %171 : vector<2x128xf32>
    %173 = arith.addf %167, %172 : vector<2x128xf32>
    %174 = vector.extract_strided_slice %0 {offsets = [0, 3, 0], sizes = [2, 1, 128], strides = [1, 1, 1]} : vector<2x4x128xf32> to vector<2x1x128xf32>
    %175 = vector.shape_cast %174 : vector<2x1x128xf32> to vector<2x128xf32>
    %c27 = arith.constant 27 : index
    %176 = memref.load %arg3[%c27] : memref<32xf32, #tpu.memory_space<smem>>
    %177 = vector.broadcast %176 : f32 to vector<2x128xf32>
    %178 = arith.mulf %175, %177 : vector<2x128xf32>
    %179 = arith.addf %173, %178 : vector<2x128xf32>
    %c6_9 = arith.constant 6 : index
    %180 = memref.load %arg4[%c6_9] : memref<8xf32, #tpu.memory_space<smem>>
    %181 = vector.broadcast %180 : f32 to vector<2x128xf32>
    %182 = arith.addf %179, %181 : vector<2x128xf32>
    %183 = vector.extract_strided_slice %0 {offsets = [0, 0, 0], sizes = [2, 1, 128], strides = [1, 1, 1]} : vector<2x4x128xf32> to vector<2x1x128xf32>
    %184 = vector.shape_cast %183 : vector<2x1x128xf32> to vector<2x128xf32>
    %c28 = arith.constant 28 : index
    %185 = memref.load %arg3[%c28] : memref<32xf32, #tpu.memory_space<smem>>
    %186 = vector.broadcast %185 : f32 to vector<2x128xf32>
    %187 = arith.mulf %184, %186 : vector<2x128xf32>
    %188 = vector.extract_strided_slice %0 {offsets = [0, 1, 0], sizes = [2, 1, 128], strides = [1, 1, 1]} : vector<2x4x128xf32> to vector<2x1x128xf32>
    %189 = vector.shape_cast %188 : vector<2x1x128xf32> to vector<2x128xf32>
    %c29 = arith.constant 29 : index
    %190 = memref.load %arg3[%c29] : memref<32xf32, #tpu.memory_space<smem>>
    %191 = vector.broadcast %190 : f32 to vector<2x128xf32>
    %192 = arith.mulf %189, %191 : vector<2x128xf32>
    %193 = arith.addf %187, %192 : vector<2x128xf32>
    %194 = vector.extract_strided_slice %0 {offsets = [0, 2, 0], sizes = [2, 1, 128], strides = [1, 1, 1]} : vector<2x4x128xf32> to vector<2x1x128xf32>
    %195 = vector.shape_cast %194 : vector<2x1x128xf32> to vector<2x128xf32>
    %c30 = arith.constant 30 : index
    %196 = memref.load %arg3[%c30] : memref<32xf32, #tpu.memory_space<smem>>
    %197 = vector.broadcast %196 : f32 to vector<2x128xf32>
    %198 = arith.mulf %195, %197 : vector<2x128xf32>
    %199 = arith.addf %193, %198 : vector<2x128xf32>
    %200 = vector.extract_strided_slice %0 {offsets = [0, 3, 0], sizes = [2, 1, 128], strides = [1, 1, 1]} : vector<2x4x128xf32> to vector<2x1x128xf32>
    %201 = vector.shape_cast %200 : vector<2x1x128xf32> to vector<2x128xf32>
    %c31 = arith.constant 31 : index
    %202 = memref.load %arg3[%c31] : memref<32xf32, #tpu.memory_space<smem>>
    %203 = vector.broadcast %202 : f32 to vector<2x128xf32>
    %204 = arith.mulf %201, %203 : vector<2x128xf32>
    %205 = arith.addf %199, %204 : vector<2x128xf32>
    %c7_10 = arith.constant 7 : index
    %206 = memref.load %arg4[%c7_10] : memref<8xf32, #tpu.memory_space<smem>>
    %207 = vector.broadcast %206 : f32 to vector<2x128xf32>
    %208 = arith.addf %205, %207 : vector<2x128xf32>
    %209 = vector.shape_cast %26 : vector<2x128xf32> to vector<2x1x128xf32>
    %210 = vector.shape_cast %52 : vector<2x128xf32> to vector<2x1x128xf32>
    %211 = vector.shape_cast %78 : vector<2x128xf32> to vector<2x1x128xf32>
    %212 = vector.shape_cast %104 : vector<2x128xf32> to vector<2x1x128xf32>
    %213 = vector.shape_cast %130 : vector<2x128xf32> to vector<2x1x128xf32>
    %214 = vector.shape_cast %156 : vector<2x128xf32> to vector<2x1x128xf32>
    %215 = vector.shape_cast %182 : vector<2x128xf32> to vector<2x1x128xf32>
    %216 = vector.shape_cast %208 : vector<2x128xf32> to vector<2x1x128xf32>
    %217 = tpu.concatenate %209, %210, %211, %212, %213, %214, %215, %216 in 1 : vector<2x1x128xf32>, vector<2x1x128xf32>, vector<2x1x128xf32>, vector<2x1x128xf32>, vector<2x1x128xf32>, vector<2x1x128xf32>, vector<2x1x128xf32>, vector<2x1x128xf32> -> vector<2x8x128xf32>
    %c0_11 = arith.constant 0 : index
    %c0_12 = arith.constant 0 : index
    %c0_13 = arith.constant 0 : index
    %218 = vector.load %arg5[%c0_11, %c0_12, %c0_13] : memref<2x8x128xf32, #tpu.memory_space<vmem>>, vector<2x8x128xf32>
    tpu.vector_store %arg5[%c0_11, %c0_12, %c0_13], %217 {strides = array<i32>} : memref<2x8x128xf32, #tpu.memory_space<vmem>>, vector<2x8x128xf32>,
    return
  }
  func.func @transform_0(%arg0: i32, %arg1: i32) -> (i32, i32, i32) {
    %c0_i32 = arith.constant 0 : i32
    %c0_i32_0 = arith.constant 0 : i32
    return %arg0, %c0_i32, %arg1 : i32, i32, i32
  }
  func.func @transform_1(%arg0: i32, %arg1: i32) -> i32 {
    %c0_i32 = arith.constant 0 : i32
    %c0_i32_0 = arith.constant 0 : i32
    return %c0_i32 : i32
  }
  func.func @transform_2(%arg0: i32, %arg1: i32) -> i32 {
    %c0_i32 = arith.constant 0 : i32
    %c0_i32_0 = arith.constant 0 : i32
    return %c0_i32 : i32
  }
  func.func @transform_3(%arg0: i32, %arg1: i32) -> (i32, i32, i32) {
    %c0_i32 = arith.constant 0 : i32
    %c0_i32_0 = arith.constant 0 : i32
    return %arg0, %c0_i32, %arg1 : i32, i32, i32
  }
}

</mosaic_0001>

<llo_original>
// kernel: tpu_custom_call.1
$region0: #{tpu_custom_call.1}
  #allocation0 [shape = 'u32[]', space=smem, size = 0x4, offset = 0x4, fixed_abs, tag = 'smem constant byte address 0x4 - core index']
  #allocation1 [shape = 'u32[144,128]{1,0:T(1,128)}', space=vmem, size = 0x12000, scoped, tag = 'internal scratch']
  %s0 = inlined_call_operand.hbm [shape: f32[2,4,256], index: 0, kind: input, shape index: {}]
  %s1 = inlined_call_operand.vmem [shape: f32[32], index: 1, kind: input, shape index: {}]
  %s2 = inlined_call_operand.vmem [shape: f32[8], index: 2, kind: input, shape index: {}]
  %s3 = inlined_call_operand.hbm [shape: f32[2,8,256], index: 3, kind: output, shape index: {}]
  %s4 = sld [smem:[#allocation0]]
  $region57: #{tpu_custom_call.1} parent=0
    _
  %s6 = ssub.s32 1, %s4
  %s7 = scalar_select 0, %s6, %s4
  $region1: #{tpu_custom_call.1} parent=0
    #allocation2 [shape = 'u8[8192]{0}', space=vmem, size = 0x2000, scoped, tag = 'input window, operand 0']
    #allocation3 [shape = 's32[2]{0}', space=sflag, size = 0x8, scoped, tag = 'scoped memory for tpu_custom_call.1']
    #allocation4 [shape = 's32[2]{0}', space=sflag, size = 0x8, scoped, tag = 'scoped memory for tpu_custom_call.1']
    #allocation5 [shape = 's32[2]{0}', space=sflag, size = 0x8, scoped, tag = 'scoped memory for tpu_custom_call.1']
    #allocation6 [shape = 'u8[512]{0}', space=smem, size = 0x200, scoped, tag = 'input window, operand 1, single buffered']
    #allocation7 [shape = 'u8[512]{0}', space=smem, size = 0x200, scoped, tag = 'input window, operand 2, single buffered']
    #allocation8 [shape = 's32[1]{0}', space=sflag, size = 0x4, scoped, tag = 'scoped memory for tpu_custom_call.1']
    #allocation9 [shape = 'u8[16384]{0}', space=vmem, size = 0x4000, scoped, tag = 'output window, operand 0']
    %8 = vsyncpa [#allocation3], 0
    %s9 = scalar_lea.sflag [#allocation3], 1
    %10 = vsyncpa %s9, 0
    %11 = vsyncpa [#allocation5], 0
    %12 = vsyncpa [#allocation8], 0
    %13 = vsyncpa [#allocation4], 0
    %s14 = scalar_lea.sflag [#allocation4], 1
    %15 = vsyncpa %s14, 0
    loop: start=0, step=1, limit=4
    $region2: #{tpu_custom_call.1} parent=1 // loop_pre_header
      _
    $region3: #{tpu_custom_call.1} parent=1 // loop_header
      %s17 = sphi 0, %s21
      %p18 = scmp.ge.s32.totalorder %s17, 4
      %s24 = sphi 0, %s36
      %s25 = sphi 0, %s32
      %s26 = sphi 0, %s24
      %s27 = sphi 0, %s25
      %s28 = sphi 0, %s26
      %s29 = sphi 0, %s27
      %s41 = sphi 0, %s43
      %s44 = sphi 0, %s41
      %s45 = sphi 0, %s44
      %s61 = sphi 0, %s45
      %s65 = sphi 0, %s65
      %s67 = sphi 0, %s65
      %s68 = sphi 0, %s67
      %s82 = sphi 0, %s68
      %s86 = sphi 0, %s86
      %s88 = sphi 0, %s86
      %s89 = sphi 0, %s88
      %s103 = sphi 0, %s89
      %s111 = sphi 0, %s113
      %s114 = sphi 0, %s111
      %s115 = sphi 0, %s114
      %s131 = sphi 0, %s115
    $region4: #{tpu_custom_call.1} parent=1 // loop_header_branch
      %20 = sbr.rel (%p18) target = $region8
    $region5: #{tpu_custom_call.1} parent=1 // loop_body
      %s22 = ssub.s32 %s17, 1
      %s23 = ssub.s32 %s17, 2
      %s30 = sadd.s32 1, %s25
      %p31 = scmp.ge.s32.totalorder %s30, 2
      %s32 = scalar_select %p31, 0, %s30
      %s33 = sadd.s32 1, %s24
      %s34 = scalar_select %p31, %s33, %s24
      %p35 = scmp.ge.s32.totalorder %s34, 1
      %s36 = scalar_select %p35, 0, %s34
      %s37 = ssub.s32 %s24, %s36
      %s38 = ssub.s32 %s25, %s32
      %s39 = sor.u32 %s37, %s38
      %p40 = scmp.eq.s32.totalorder %s39, 0
      %s42 = sadd.s32 %s41, 1
      %s43 = scalar_select %p40, %s41, %s42
      %p46 = pneg %p40
      %p47 = scmp.eq.s32.totalorder %s17, 1
      %p48 = por %p46, %p47
      %p49 = scmp.ne.s32.totalorder %s41, %s44
      %p50 = scmp.eq.s32.totalorder %s17, 0
      %p51 = por %p49, %p50
      %p52 = scmp.ne.s32.totalorder %s41, %s44
      %p53 = scmp.eq.s32.totalorder %s22, 1
      %p54 = por %p52, %p53
      %p55 = scmp.ne.s32.totalorder %s44, %s45
      %p56 = scmp.eq.s32.totalorder %s22, 0
      %p57 = por %p55, %p56
      %p58 = scmp.ne.s32.totalorder %s44, %s45
      %p59 = scmp.eq.s32.totalorder %s23, 1
      %p60 = por %p58, %p59
      %p62 = scmp.ne.s32.totalorder %s45, %s61
      %p63 = scmp.eq.s32.totalorder %s23, 0
      %p64 = por %p62, %p63
      %s66 = sadd.s32 %s65, 1
      %p69 = scmp.eq.s32.totalorder %s17, 1
      %p70 = scmp.ne.s32.totalorder %s65, %s67
      %p71 = scmp.eq.s32.totalorder %s17, 0
      %p72 = por %p70, %p71
      %p73 = scmp.ne.s32.totalorder %s65, %s67
      %p74 = scmp.eq.s32.totalorder %s22, 1
      %p75 = por %p73, %p74
      %p76 = scmp.ne.s32.totalorder %s67, %s68
      %p77 = scmp.eq.s32.totalorder %s22, 0
      %p78 = por %p76, %p77
      %p79 = scmp.ne.s32.totalorder %s67, %s68
      %p80 = scmp.eq.s32.totalorder %s23, 1
      %p81 = por %p79, %p80
      %p83 = scmp.ne.s32.totalorder %s68, %s82
      %p84 = scmp.eq.s32.totalorder %s23, 0
      %p85 = por %p83, %p84
      %s87 = sadd.s32 %s86, 1
      %p90 = scmp.eq.s32.totalorder %s17, 1
      %p91 = scmp.ne.s32.totalorder %s86, %s88
      %p92 = scmp.eq.s32.totalorder %s17, 0
      %p93 = por %p91, %p92
      %p94 = scmp.ne.s32.totalorder %s86, %s88
      %p95 = scmp.eq.s32.totalorder %s22, 1
      %p96 = por %p94, %p95
      %p97 = scmp.ne.s32.totalorder %s88, %s89
      %p98 = scmp.eq.s32.totalorder %s22, 0
      %p99 = por %p97, %p98
      %p100 = scmp.ne.s32.totalorder %s88, %s89
      %p101 = scmp.eq.s32.totalorder %s23, 1
      %p102 = por %p100, %p101
      %p104 = scmp.ne.s32.totalorder %s89, %s103
      %p105 = scmp.eq.s32.totalorder %s23, 0
      %p106 = por %p104, %p105
      %s107 = ssub.s32 %s24, %s36
      %s108 = ssub.s32 %s25, %s32
      %s109 = sor.u32 %s107, %s108
      %p110 = scmp.eq.s32.totalorder %s109, 0
      %s112 = sadd.s32 %s111, 1
      %s113 = scalar_select %p110, %s111, %s112
      %p116 = pneg %p110
      %p117 = scmp.eq.s32.totalorder %s17, 1
      %p118 = por %p116, %p117
      %p119 = scmp.ne.s32.totalorder %s111, %s114
      %p120 = scmp.eq.s32.totalorder %s17, 0
      %p121 = por %p119, %p120
      %p122 = scmp.ne.s32.totalorder %s111, %s114
      %p123 = scmp.eq.s32.totalorder %s22, 1
      %p124 = por %p122, %p123
      %p125 = scmp.ne.s32.totalorder %s114, %s115
      %p126 = scmp.eq.s32.totalorder %s22, 0
      %p127 = por %p125, %p126
      %p128 = scmp.ne.s32.totalorder %s114, %s115
      %p129 = scmp.eq.s32.totalorder %s23, 1
      %p130 = por %p128, %p129
      %p132 = scmp.ne.s32.totalorder %s115, %s131
      %p133 = scmp.eq.s32.totalorder %s23, 0
      %p134 = por %p132, %p133
      %p135 = scmp.le.s32.totalorder 1, %s17
      %p136 = scmp.lt.s32.totalorder %s17, 3
      %p137 = pnand %p135, %p136
      %p138 = pneg %p137
      // Predicated region
      $region9: #{tpu_custom_call.1} parent=5 // pred_check
        _
      $region10: #{tpu_custom_call.1} parent=5 // pred_check_branch
        %140 = sbr.rel (%p137) target = $region12
      $region11: #{tpu_custom_call.1} parent=5 // pred_region
        %s141 = ssub.s32 %s17, 1
        // Predicated region
        $region13: #{tpu_custom_call.1} parent=11 // pred_check
          %p142 = pneg %p78
        $region14: #{tpu_custom_call.1} parent=11 // pred_check_branch
          %144 = sbr.rel (%p142) target = $region16
        $region15: #{tpu_custom_call.1} parent=11 // pred_region
          %s146 = ssub.s32 16, 16
          %147 = vsyncadd [#allocation5], %s146
          %s149 = sshll.u32 %s1, 4
          %s150 = int_to_ptr.vmem [resolvable:$true] %s149
          %152 = dma.vmem_to_smem %s150, 16, [#allocation6], [#allocation5]
        $region16: #{tpu_custom_call.1} parent=11 // pred_fallthru
          _
        // Predicated region
        $region17: #{tpu_custom_call.1} parent=11 // pred_check
          %p153 = pneg %p99
        $region18: #{tpu_custom_call.1} parent=11 // pred_check_branch
          %155 = sbr.rel (%p153) target = $region20
        $region19: #{tpu_custom_call.1} parent=11 // pred_region
          %s157 = ssub.s32 16, 16
          %158 = vsyncadd [#allocation8], %s157
          %s160 = sshll.u32 %s2, 4
          %s161 = int_to_ptr.vmem [resolvable:$true] %s160
          %163 = dma.vmem_to_smem %s161, 16, [#allocation7], [#allocation8]
        $region20: #{tpu_custom_call.1} parent=11 // pred_fallthru
          _
      $region12: #{tpu_custom_call.1} parent=5 // pred_fallthru
        _
      %p164 = scmp.lt.s32.totalorder %s17, 2
      // Predicated region
      $region21: #{tpu_custom_call.1} parent=5 // pred_check
        %p165 = pneg %p164
      $region22: #{tpu_custom_call.1} parent=5 // pred_check_branch
        %167 = sbr.rel (%p165) target = $region24
      $region23: #{tpu_custom_call.1} parent=5 // pred_region
        // Predicated region
        $region25: #{tpu_custom_call.1} parent=23 // pred_check
          %p168 = pneg %p51
        $region26: #{tpu_custom_call.1} parent=23 // pred_check_branch
          %170 = sbr.rel (%p168) target = $region28
        $region27: #{tpu_custom_call.1} parent=23 // pred_region
          %s171 = sand.u32 %s41, 1
          %s172 = scalar_lea.sflag [#allocation3], %s171
          %s173 = sand.u32 %s41, 1
          %s174 = smul.addr %s173, 8
          %s175 = scalar_lea.vmem [#allocation2], %s174
          %s176 = smul.u32 2, %s24
          %s178 = ssub.s32 128, 128
          %179 = vsyncadd %s172, %s178
          %s180 = smul.addr %s176, 2
          %s181 = sadd.s32 %s25, %s180
          %s182 = smul.addr %s181, 64
          %s183 = scalar_lea.hbm %s0, %s182
          %s184 = sshll.u32 %s175, 4
          %s185 = int_to_ptr.vmem [resolvable:$true] %s184
          %190 = dma.hbm_to_vmem [thread:$0]  %s183, 128, %s185, %s172, 128, 64, 4
        $region28: #{tpu_custom_call.1} parent=23 // pred_fallthru
          _
      $region24: #{tpu_custom_call.1} parent=5 // pred_fallthru
        _
      %p191 = scmp.le.s32.totalorder 1, %s17
      %p192 = scmp.lt.s32.totalorder %s17, 3
      %p193 = pnand %p191, %p192
      %p194 = pneg %p193
      // Predicated region
      $region29: #{tpu_custom_call.1} parent=5 // pred_check
        _
      $region30: #{tpu_custom_call.1} parent=5 // pred_check_branch
        %196 = sbr.rel (%p193) target = $region32
      $region31: #{tpu_custom_call.1} parent=5 // pred_region
        %s197 = ssub.s32 %s17, 1
        %s198 = sand.u32 %s44, 1
        %s199 = scalar_lea.sflag [#allocation3], %s198
        %s200 = sand.u32 %s44, 1
        %s201 = smul.addr %s200, 8
        %s202 = scalar_lea.vmem [#allocation2], %s201
        // Predicated region
        $region33: #{tpu_custom_call.1} parent=31 // pred_check
          %p203 = pneg %p57
        $region34: #{tpu_custom_call.1} parent=31 // pred_check_branch
          %205 = sbr.rel (%p203) target = $region36
        $region35: #{tpu_custom_call.1} parent=31 // pred_region
          %206 = dma.done %s199, 128
        $region36: #{tpu_custom_call.1} parent=31 // pred_fallthru
          _
        // Predicated region
        $region37: #{tpu_custom_call.1} parent=31 // pred_check
          %p207 = pneg %p78
        $region38: #{tpu_custom_call.1} parent=31 // pred_check_branch
          %209 = sbr.rel (%p207) target = $region40
        $region39: #{tpu_custom_call.1} parent=31 // pred_region
          %210 = dma.done [#allocation5], 16
        $region40: #{tpu_custom_call.1} parent=31 // pred_fallthru
          _
        // Predicated region
        $region41: #{tpu_custom_call.1} parent=31 // pred_check
          %p211 = pneg %p99
        $region42: #{tpu_custom_call.1} parent=31 // pred_check_branch
          %213 = sbr.rel (%p211) target = $region44
        $region43: #{tpu_custom_call.1} parent=31 // pred_region
          %214 = dma.done [#allocation8], 16
        $region44: #{tpu_custom_call.1} parent=31 // pred_fallthru
          _
        %215 = sfence
        %s216 = sand.u32 %s44, 1
        %s217 = scalar_lea.sflag [#allocation3], %s216
        %s218 = sand.u32 %s44, 1
        %s219 = smul.addr %s218, 8
        %s220 = scalar_lea.vmem [#allocation2], %s219
        %p221 = pneg %p57
        %p222 = pneg %p54
        %p223 = pneg %p78
        %p224 = pneg %p75
        %p225 = pneg %p99
        %p226 = pneg %p96
        %p227 = pneg %p127
        %p228 = pneg %p124
        %s229 = sand.u32 %s114, 1
        %s230 = scalar_lea.sflag [#allocation4], %s229
        %s231 = sand.u32 %s114, 1
        %s232 = smul.addr %s231, 16
        %s233 = scalar_lea.vmem [#allocation9], %s232
        %s234 = smul.u32 2, %s26
        %s235 = smul.u32 2, %s26
        %v236 = vld [vmem:[%s202] sm:$0xf]
        %v237 = vld [vmem:[%s202 + $0x4] sm:$0xf]
        %s238 = sld [smem:[#allocation6]]
        %v239 = vstv %s238
        %v240 = vmul.f32 %v236, %v239
        %v241 = vmul.f32 %v237, %v239
        %s242 = sld [smem:[#allocation6 + $0x1]]
        %v243 = vstv %s242
        %v244 = vmul.f32 %v236, %v243
        %v245 = vmul.f32 %v237, %v243
        %v248 = vrot.slane %v244, 1
        %v249 = vrot.slane %v245, 1
        %v252 = vadd.f32 %v240, %v248
        %v253 = vadd.f32 %v241, %v249
        %s254 = sld [smem:[#allocation6 + $0x2]]
        %v255 = vstv %s254
        %v256 = vmul.f32 %v236, %v255
        %v257 = vmul.f32 %v237, %v255
        %v260 = vrot.slane %v256, 2
        %v261 = vrot.slane %v257, 2
        %v264 = vadd.f32 %v252, %v260
        %v265 = vadd.f32 %v253, %v261
        %s266 = sld [smem:[#allocation6 + $0x3]]
        %v267 = vstv %s266
        %v268 = vmul.f32 %v236, %v267
        %v269 = vmul.f32 %v237, %v267
        %v272 = vrot.slane %v268, 3
        %v273 = vrot.slane %v269, 3
        %v276 = vadd.f32 %v264, %v272
        %v277 = vadd.f32 %v265, %v273
        %s278 = sld [smem:[#allocation7]]
        %v279 = vstv %s278
        %v280 = vadd.f32 %v276, %v279
        %v281 = vadd.f32 %v277, %v279
        %s282 = sld [smem:[#allocation6 + $0x4]]
        %v283 = vstv %s282
        %v284 = vmul.f32 %v236, %v283
        %v285 = vmul.f32 %v237, %v283
        %s286 = sld [smem:[#allocation6 + $0x5]]
        %v287 = vstv %s286
        %v288 = vmul.f32 %v236, %v287
        %v289 = vmul.f32 %v237, %v287
        %v292 = vrot.slane %v288, 1
        %v293 = vrot.slane %v289, 1
        %v296 = vadd.f32 %v284, %v292
        %v297 = vadd.f32 %v285, %v293
        %s298 = sld [smem:[#allocation6 + $0x6]]
        %v299 = vstv %s298
        %v300 = vmul.f32 %v236, %v299
        %v301 = vmul.f32 %v237, %v299
        %v304 = vrot.slane %v300, 2
        %v305 = vrot.slane %v301, 2
        %v308 = vadd.f32 %v296, %v304
        %v309 = vadd.f32 %v297, %v305
        %s310 = sld [smem:[#allocation6 + $0x7]]
        %v311 = vstv %s310
        %v312 = vmul.f32 %v236, %v311
        %v313 = vmul.f32 %v237, %v311
        %v316 = vrot.slane %v312, 3
        %v317 = vrot.slane %v313, 3
        %v320 = vadd.f32 %v308, %v316
        %v321 = vadd.f32 %v309, %v317
        %s322 = sld [smem:[#allocation7 + $0x1]]
        %v323 = vstv %s322
        %v324 = vadd.f32 %v320, %v323
        %v325 = vadd.f32 %v321, %v323
        %s326 = sld [smem:[#allocation6 + $0x8]]
        %v327 = vstv %s326
        %v328 = vmul.f32 %v236, %v327
        %v329 = vmul.f32 %v237, %v327
        %s330 = sld [smem:[#allocation6 + $0x9]]
        %v331 = vstv %s330
        %v332 = vmul.f32 %v236, %v331
        %v333 = vmul.f32 %v237, %v331
        %v336 = vrot.slane %v332, 1
        %v337 = vrot.slane %v333, 1
        %v340 = vadd.f32 %v328, %v336
        %v341 = vadd.f32 %v329, %v337
        %s342 = sld [smem:[#allocation6 + $0xa]]
        %v343 = vstv %s342
        %v344 = vmul.f32 %v236, %v343
        %v345 = vmul.f32 %v237, %v343
        %v348 = vrot.slane %v344, 2
        %v349 = vrot.slane %v345, 2
        %v352 = vadd.f32 %v340, %v348
        %v353 = vadd.f32 %v341, %v349
        %s354 = sld [smem:[#allocation6 + $0xb]]
        %v355 = vstv %s354
        %v356 = vmul.f32 %v236, %v355
        %v357 = vmul.f32 %v237, %v355
        %v360 = vrot.slane %v356, 3
        %v361 = vrot.slane %v357, 3
        %v364 = vadd.f32 %v352, %v360
        %v365 = vadd.f32 %v353, %v361
        %s366 = sld [smem:[#allocation7 + $0x2]]
        %v367 = vstv %s366
        %v368 = vadd.f32 %v364, %v367
        %v369 = vadd.f32 %v365, %v367
        %s370 = sld [smem:[#allocation6 + $0xc]]
        %v371 = vstv %s370
        %v372 = vmul.f32 %v236, %v371
        %v373 = vmul.f32 %v237, %v371
        %s374 = sld [smem:[#allocation6 + $0xd]]
        %v375 = vstv %s374
        %v376 = vmul.f32 %v236, %v375
        %v377 = vmul.f32 %v237, %v375
        %v380 = vrot.slane %v376, 1
        %v381 = vrot.slane %v377, 1
        %v384 = vadd.f32 %v372, %v380
        %v385 = vadd.f32 %v373, %v381
        %s386 = sld [smem:[#allocation6 + $0xe]]
        %v387 = vstv %s386
        %v388 = vmul.f32 %v236, %v387
        %v389 = vmul.f32 %v237, %v387
        %v392 = vrot.slane %v388, 2
        %v393 = vrot.slane %v389, 2
        %v396 = vadd.f32 %v384, %v392
        %v397 = vadd.f32 %v385, %v393
        %s398 = sld [smem:[#allocation6 + $0xf]]
        %v399 = vstv %s398
        %v400 = vmul.f32 %v236, %v399
        %v401 = vmul.f32 %v237, %v399
        %v404 = vrot.slane %v400, 3
        %v405 = vrot.slane %v401, 3
        %v408 = vadd.f32 %v396, %v404
        %v409 = vadd.f32 %v397, %v405
        %s410 = sld [smem:[#allocation7 + $0x3]]
        %v411 = vstv %s410
        %v412 = vadd.f32 %v408, %v411
        %v413 = vadd.f32 %v409, %v411
        %s414 = sld [smem:[#allocation6 + $0x10]]
        %v415 = vstv %s414
        %v416 = vmul.f32 %v236, %v415
        %v417 = vmul.f32 %v237, %v415
        %s418 = sld [smem:[#allocation6 + $0x11]]
        %v419 = vstv %s418
        %v420 = vmul.f32 %v236, %v419
        %v421 = vmul.f32 %v237, %v419
        %v424 = vrot.slane %v420, 1
        %v425 = vrot.slane %v421, 1
        %v428 = vadd.f32 %v416, %v424
        %v429 = vadd.f32 %v417, %v425
        %s430 = sld [smem:[#allocation6 + $0x12]]
        %v431 = vstv %s430
        %v432 = vmul.f32 %v236, %v431
        %v433 = vmul.f32 %v237, %v431
        %v436 = vrot.slane %v432, 2
        %v437 = vrot.slane %v433, 2
        %v440 = vadd.f32 %v428, %v436
        %v441 = vadd.f32 %v429, %v437
        %s442 = sld [smem:[#allocation6 + $0x13]]
        %v443 = vstv %s442
        %v444 = vmul.f32 %v236, %v443
        %v445 = vmul.f32 %v237, %v443
        %v448 = vrot.slane %v444, 3
        %v449 = vrot.slane %v445, 3
        %v452 = vadd.f32 %v440, %v448
        %v453 = vadd.f32 %v441, %v449
        %s454 = sld [smem:[#allocation7 + $0x4]]
        %v455 = vstv %s454
        %v456 = vadd.f32 %v452, %v455
        %v457 = vadd.f32 %v453, %v455
        %s458 = sld [smem:[#allocation6 + $0x14]]
        %v459 = vstv %s458
        %v460 = vmul.f32 %v236, %v459
        %v461 = vmul.f32 %v237, %v459
        %s462 = sld [smem:[#allocation6 + $0x15]]
        %v463 = vstv %s462
        %v464 = vmul.f32 %v236, %v463
        %v465 = vmul.f32 %v237, %v463
        %v468 = vrot.slane %v464, 1
        %v469 = vrot.slane %v465, 1
        %v472 = vadd.f32 %v460, %v468
        %v473 = vadd.f32 %v461, %v469
        %s474 = sld [smem:[#allocation6 + $0x16]]
        %v475 = vstv %s474
        %v476 = vmul.f32 %v236, %v475
        %v477 = vmul.f32 %v237, %v475
        %v480 = vrot.slane %v476, 2
        %v481 = vrot.slane %v477, 2
        %v484 = vadd.f32 %v472, %v480
        %v485 = vadd.f32 %v473, %v481
        %s486 = sld [smem:[#allocation6 + $0x17]]
        %v487 = vstv %s486
        %v488 = vmul.f32 %v236, %v487
        %v489 = vmul.f32 %v237, %v487
        %v492 = vrot.slane %v488, 3
        %v493 = vrot.slane %v489, 3
        %v496 = vadd.f32 %v484, %v492
        %v497 = vadd.f32 %v485, %v493
        %s498 = sld [smem:[#allocation7 + $0x5]]
        %v499 = vstv %s498
        %v500 = vadd.f32 %v496, %v499
        %v501 = vadd.f32 %v497, %v499
        %s502 = sld [smem:[#allocation6 + $0x18]]
        %v503 = vstv %s502
        %v504 = vmul.f32 %v236, %v503
        %v505 = vmul.f32 %v237, %v503
        %s506 = sld [smem:[#allocation6 + $0x19]]
        %v507 = vstv %s506
        %v508 = vmul.f32 %v236, %v507
        %v509 = vmul.f32 %v237, %v507
        %v512 = vrot.slane %v508, 1
        %v513 = vrot.slane %v509, 1
        %v516 = vadd.f32 %v504, %v512
        %v517 = vadd.f32 %v505, %v513
        %s518 = sld [smem:[#allocation6 + $0x1a]]
        %v519 = vstv %s518
        %v520 = vmul.f32 %v236, %v519
        %v521 = vmul.f32 %v237, %v519
        %v524 = vrot.slane %v520, 2
        %v525 = vrot.slane %v521, 2
        %v528 = vadd.f32 %v516, %v524
        %v529 = vadd.f32 %v517, %v525
        %s530 = sld [smem:[#allocation6 + $0x1b]]
        %v531 = vstv %s530
        %v532 = vmul.f32 %v236, %v531
        %v533 = vmul.f32 %v237, %v531
        %v536 = vrot.slane %v532, 3
        %v537 = vrot.slane %v533, 3
        %v540 = vadd.f32 %v528, %v536
        %v541 = vadd.f32 %v529, %v537
        %s542 = sld [smem:[#allocation7 + $0x6]]
        %v543 = vstv %s542
        %v544 = vadd.f32 %v540, %v543
        %v545 = vadd.f32 %v541, %v543
        %s546 = sld [smem:[#allocation6 + $0x1c]]
        %v547 = vstv %s546
        %v548 = vmul.f32 %v236, %v547
        %v549 = vmul.f32 %v237, %v547
        %s550 = sld [smem:[#allocation6 + $0x1d]]
        %v551 = vstv %s550
        %v552 = vmul.f32 %v236, %v551
        %v553 = vmul.f32 %v237, %v551
        %v556 = vrot.slane %v552, 1
        %v557 = vrot.slane %v553, 1
        %v560 = vadd.f32 %v548, %v556
        %v561 = vadd.f32 %v549, %v557
        %s562 = sld [smem:[#allocation6 + $0x1e]]
        %v563 = vstv %s562
        %v564 = vmul.f32 %v236, %v563
        %v565 = vmul.f32 %v237, %v563
        %v568 = vrot.slane %v564, 2
        %v569 = vrot.slane %v565, 2
        %v572 = vadd.f32 %v560, %v568
        %v573 = vadd.f32 %v561, %v569
        %s574 = sld [smem:[#allocation6 + $0x1f]]
        %v575 = vstv %s574
        %v576 = vmul.f32 %v236, %v575
        %v577 = vmul.f32 %v237, %v575
        %v580 = vrot.slane %v576, 3
        %v581 = vrot.slane %v577, 3
        %v584 = vadd.f32 %v572, %v580
        %v585 = vadd.f32 %v573, %v581
        %s586 = sld [smem:[#allocation7 + $0x7]]
        %v587 = vstv %s586
        %v588 = vadd.f32 %v584, %v587
        %v589 = vadd.f32 %v585, %v587
        %v592 = vrot.slane %v324, 7
        %v593 = vrot.slane %v325, 7
        %v598 = vrot.slane %v368, 6
        %v599 = vrot.slane %v369, 6
        %v604 = vrot.slane %v412, 5
        %v605 = vrot.slane %v413, 5
        %v610 = vrot.slane %v456, 4
        %v611 = vrot.slane %v457, 4
        %v616 = vrot.slane %v500, 3
        %v617 = vrot.slane %v501, 3
        %v622 = vrot.slane %v544, 2
        %v623 = vrot.slane %v545, 2
        %v628 = vrot.slane %v588, 1
        %v629 = vrot.slane %v589, 1
        %vm632 = vcmask 1040384
        %v633 = vsel %vm632, %v280, %v592
        %v634 = vsel %vm632, %v281, %v593
        %vm635 = vcmask 1041408
        %v636 = vsel %vm635, %v633, %v598
        %v637 = vsel %vm635, %v634, %v599
        %vm638 = vcmask 1042432
        %v639 = vsel %vm638, %v636, %v604
        %v640 = vsel %vm638, %v637, %v605
        %vm641 = vcmask 1043456
        %v642 = vsel %vm641, %v639, %v610
        %v643 = vsel %vm641, %v640, %v611
        %vm644 = vcmask 1044480
        %v645 = vsel %vm644, %v642, %v616
        %v646 = vsel %vm644, %v643, %v617
        %vm647 = vcmask 1045504
        %v648 = vsel %vm647, %v645, %v622
        %v649 = vsel %vm647, %v646, %v623
        %vm650 = vcmask 1046528
        %v651 = vsel %vm650, %v648, %v628
        %v652 = vsel %vm650, %v649, %v629
        %653 = vst [vmem:[%s233] sm:$0xff] %v651
        %654 = vst [vmem:[%s233 + $0x8] sm:$0xff] %v652
        %s655 = sand.u32 %s114, 1
        %s656 = scalar_lea.sflag [#allocation4], %s655
        %s657 = sand.u32 %s114, 1
        %s658 = smul.addr %s657, 16
        %s659 = scalar_lea.vmem [#allocation9], %s658
        // Predicated region
        $region45: #{tpu_custom_call.1} parent=31 // pred_check
          %p660 = pneg %p124
        $region46: #{tpu_custom_call.1} parent=31 // pred_check_branch
          %662 = sbr.rel (%p660) target = $region48
        $region47: #{tpu_custom_call.1} parent=31 // pred_region
          %s663 = smul.u32 2, %s26
          %s665 = ssub.s32 256, 256
          %666 = vsyncadd %s656, %s665
          %s667 = smul.addr %s663, 2
          %s668 = sadd.s32 %s27, %s667
          %s669 = smul.addr %s668, 128
          %s670 = scalar_lea.hbm %s3, %s669
          %s671 = sshll.u32 %s659, 4
          %s672 = int_to_ptr.vmem [resolvable:$true] %s671
          %677 = dma.vmem_to_hbm [thread:$0]  %s672, 256, %s670, %s656, 128, 256, 8
        $region48: #{tpu_custom_call.1} parent=31 // pred_fallthru
          _
      $region32: #{tpu_custom_call.1} parent=5 // pred_fallthru
        _
      %p678 = scmp.le.s32.totalorder 2, %s17
      // Predicated region
      $region49: #{tpu_custom_call.1} parent=5 // pred_check
        %p679 = pneg %p678
      $region50: #{tpu_custom_call.1} parent=5 // pred_check_branch
        %681 = sbr.rel (%p679) target = $region52
      $region51: #{tpu_custom_call.1} parent=5 // pred_region
        %s682 = ssub.s32 %s17, 2
        // Predicated region
        $region53: #{tpu_custom_call.1} parent=51 // pred_check
          %p683 = pneg %p130
        $region54: #{tpu_custom_call.1} parent=51 // pred_check_branch
          %685 = sbr.rel (%p683) target = $region56
        $region55: #{tpu_custom_call.1} parent=51 // pred_region
          %s686 = sand.u32 %s115, 1
          %s687 = scalar_lea.sflag [#allocation4], %s686
          %s688 = sand.u32 %s115, 1
          %s689 = smul.addr %s688, 16
          %s690 = scalar_lea.vmem [#allocation9], %s689
          %691 = dma.done %s687, 256
        $region56: #{tpu_custom_call.1} parent=51 // pred_fallthru
          _
      $region52: #{tpu_custom_call.1} parent=5 // pred_fallthru
        _
    $region6: #{tpu_custom_call.1} parent=1 // loop_footer
      %s21 = sadd.s32 1, %s17
    $region7: #{tpu_custom_call.1} parent=1 // loop_footer_branch
      %16 = sbr.rel target = $region3
    $region8: #{tpu_custom_call.1} parent=1 // loop_exit
      _
    %692 = vsyncpa [#allocation3], 1
    %s693 = scalar_lea.sflag [#allocation3], 1
    %694 = vsyncpa %s693, 1
    %695 = vsyncpa [#allocation4], 1
    %s696 = scalar_lea.sflag [#allocation4], 1
    %697 = vsyncpa %s696, 1
    %698 = vsyncpa [#allocation5], 1
    %s699 = scalar_lea.sflag [#allocation5], 1
    %700 = vsyncpa %s699, 1
    %701 = vsyncpa [#allocation8], 1

</llo_original>
